<compile_context>
chip_gen: v5e
topology: v5e:2x2
jax: 0.10.0
libtpu: 0.0.40
codegen_flags: <defaults>
</compile_context>

<pallas_src>
import jax
import jax.numpy as jnp
from jax.experimental import pallas as pl
from jax.experimental.pallas import tpu as pltpu

D_MODEL = 32
LANES = 128

# Static row layout of the packed parameter slab ([R, 128] f32, zero padded).
# Zero-fill of lanes >= d_model in bias / fc rows is what makes the full
# 128-lane sum in the kernel correct -- keep that invariant.
ROW_WJ_PROC = 0      # W_job[0, :]  (proc-time column)
ROW_WJ_ASGN = 1      # W_job[1, :]  (assigned column)
ROW_B_JOB = 2        # b_job
ROW_B_MACH = 3       # b_mach
ROW_FC_TOP = 4       # w_fc[:d_model, 0]
ROW_FC_BOT = 5       # w_fc[d_model:, 0]
ROW_B_FC = 6         # b_fc at lane 0, zeros elsewhere
ROW_W_MACH = 8       # W_mach[k, :] rows, aligned to a sublane-tile boundary


def _slab_rows(n_machines: int) -> int:
    rows = ROW_W_MACH + n_machines
    return ((rows + 7) // 8) * 8


# ----------------------------------------------------------------------------
# Shared kernel core (pure VPU + XLU, no MXU)
# ----------------------------------------------------------------------------
def _core(mean_proc, mean_asgn, mt_col, p_ref, n_machines):
    # Job path: mean folded into Linear(2, d_model) -> two scalar*row mul-adds.
    job_feat = (mean_proc * p_ref[ROW_WJ_PROC:ROW_WJ_PROC + 1, :]
                + mean_asgn * p_ref[ROW_WJ_ASGN:ROW_WJ_ASGN + 1, :]
                + p_ref[ROW_B_JOB:ROW_B_JOB + 1, :])

    # Machine path: vectorized contraction over sublanes:
    # [n_machines,1] * [n_machines,128] (VPU) + sublane reduce (XLU).
    w_mach = p_ref[ROW_W_MACH:ROW_W_MACH + n_machines, :]
    mach_feat = (jnp.sum(mt_col * w_mach, axis=0, keepdims=True)
                 + p_ref[ROW_B_MACH:ROW_B_MACH + 1, :])

    # fc: Linear(2*d_model, 1) with w_fc split in halves (no concat);
    # b_fc already lives in the slab (lane 0 of ROW_B_FC).
    acc = (job_feat * p_ref[ROW_FC_TOP:ROW_FC_TOP + 1, :]
           + mach_feat * p_ref[ROW_FC_BOT:ROW_FC_BOT + 1, :]
           + p_ref[ROW_B_FC:ROW_B_FC + 1, :])
    return jnp.sum(acc)          # XLU lane reduce -> scalar (includes b_fc)


def _make_single_kernel(n_jobs: int, n_machines: int):
    inv_n = 1.0 / float(n_jobs)

    def kernel(proc_ref, asgn_ref, mt_ref, p_ref, out_ref):
        # proc/asgn refs are [1, n_jobs]; means computed in-kernel.
        mean_p = jnp.sum(proc_ref[...]) * inv_n
        mean_a = jnp.sum(asgn_ref[...]) * inv_n
        out_ref[0] = _core(mean_p, mean_a, mt_ref[...], p_ref, n_machines)

    return kernel


def _make_batched_kernel(n_jobs: int, n_machines: int):
    inv_n = 1.0 / float(n_jobs)

    def kernel(proc_ref, asgn_ref, mt_ref, p_ref, out_ref):
        # Blocks: proc/asgn [1,1,n_jobs], mt [1,n_machines,1], out [1,1,128].
        mean_p = jnp.sum(proc_ref[0]) * inv_n
        mean_a = jnp.sum(asgn_ref[0]) * inv_n
        val = _core(mean_p, mean_a, mt_ref[0], p_ref, n_machines)
        out_ref[0] = jnp.broadcast_to(val, (1, LANES)).astype(out_ref.dtype)

    return kernel


# ----------------------------------------------------------------------------
# Wrappers
# ----------------------------------------------------------------------------
def critic_forward(proc_times, assigned, machine_times, param_slab):
    """Single evaluation. Returns a 0-d value (matches `value.squeeze(-1)`)."""
    n_jobs = proc_times.shape[0]
    n_machines = machine_times.shape[0]

    proc2 = proc_times.astype(jnp.float32)[None, :]          # [1, n_jobs]
    asgn2 = assigned.astype(jnp.float32)[None, :]             # [1, n_jobs]
    mt_col = machine_times.astype(jnp.float32)[:, None]       # [n_machines, 1]

    out = pl.pallas_call(
        _make_single_kernel(n_jobs, n_machines),
        out_shape=jax.ShapeDtypeStruct((1,), jnp.float32),
        in_specs=[pl.BlockSpec(memory_space=pltpu.MemorySpace.VMEM),
                  pl.BlockSpec(memory_space=pltpu.MemorySpace.VMEM),
                  pl.BlockSpec(memory_space=pltpu.MemorySpace.VMEM),
                  pl.BlockSpec(memory_space=pltpu.MemorySpace.VMEM)],
        out_specs=pl.BlockSpec(memory_space=pltpu.MemorySpace.SMEM),
    )(proc2, asgn2, mt_col, param_slab)
    return out[0]


def critic_forward_batched(proc_times, assigned, machine_times, param_slab):
    """Batched evaluation over B independent (proc, assigned, machine_times)
    triples; amortizes the pallas_call launch and the param-slab DMA."""
    B, n_jobs = proc_times.shape
    n_machines = machine_times.shape[1]
    rp = _slab_rows(n_machines)

    proc3 = proc_times.astype(jnp.float32)[:, None, :]         # [B,1,n_jobs]
    asgn3 = assigned.astype(jnp.float32)[:, None, :]            # [B,1,n_jobs]
    mt3 = machine_times.astype(jnp.float32)[:, :, None]         # [B,n_machines,1]

    out = pl.pallas_call(
        _make_batched_kernel(n_jobs, n_machines),
        out_shape=jax.ShapeDtypeStruct((B, 1, LANES), jnp.float32),
        grid=(B,),
        in_specs=[
            pl.BlockSpec((1, 1, n_jobs), lambda b: (b, 0, 0)),
            pl.BlockSpec((1, 1, n_jobs), lambda b: (b, 0, 0)),
            pl.BlockSpec((1, n_machines, 1), lambda b: (b, 0, 0)),
            pl.BlockSpec((rp, LANES), lambda b: (0, 0)),   # slab resident once
        ],
        out_specs=pl.BlockSpec((1, 1, LANES), lambda b: (b, 0, 0)),
        compiler_params=pltpu.CompilerParams(
            dimension_semantics=("parallel",)),               # dual-TC on v7x
    )(proc3, asgn3, mt3, param_slab)
    return out[:, 0, 0]


# ----------------------------------------------------------------------------
# Parameters (torch.nn.Linear-style init; weights stored transposed [in, out])
# ----------------------------------------------------------------------------
def init_params(key, n_machines, d_model=D_MODEL):
    ks = jax.random.split(key, 6)

    def linear(kw, kb, fan_in, fan_out):
        bound = 1.0 / jnp.sqrt(jnp.float32(fan_in))
        w = jax.random.uniform(kw, (fan_in, fan_out), jnp.float32, -bound, bound)
        b = jax.random.uniform(kb, (1, fan_out), jnp.float32, -bound, bound)
        return w, b

    w_job, b_job = linear(ks[0], ks[1], 2, d_model)
    w_mach, b_mach = linear(ks[2], ks[3], n_machines, d_model)
    w_fc, b_fc = linear(ks[4], ks[5], 2 * d_model, 1)
    return (w_job, b_job, w_mach, b_mach, w_fc, b_fc)


def pack_params(params, n_machines, d_model=D_MODEL):
    """Pack all weights (incl. b_fc) once into one lane-dense [R,128] f32 slab."""
    assert d_model <= LANES, "d_model must fit in one 128-lane row"
    w_job, b_job, w_mach, b_mach, w_fc, b_fc = params

    slab = jnp.zeros((_slab_rows(n_machines), LANES), jnp.float32)

    def put(s, r, vec):
        vec = jnp.reshape(vec, (-1,)).astype(jnp.float32)
        return s.at[r, :vec.shape[0]].set(vec)

    slab = put(slab, ROW_WJ_PROC, w_job[0])
    slab = put(slab, ROW_WJ_ASGN, w_job[1])
    slab = put(slab, ROW_B_JOB, b_job)
    slab = put(slab, ROW_B_MACH, b_mach)
    slab = put(slab, ROW_FC_TOP, w_fc[:d_model, 0])
    slab = put(slab, ROW_FC_BOT, w_fc[d_model:, 0])
    slab = put(slab, ROW_B_FC, b_fc)                 # lane 0 only, rest zero
    for k in range(n_machines):
        slab = put(slab, ROW_W_MACH + k, w_mach[k])
    return slab


# ----------------------------------------------------------------------------
# Pure-JAX reference (mirrors the PyTorch forward, raw params)
# ----------------------------------------------------------------------------
def critic_reference(proc_times, assigned, machine_times, params):
    w_job, b_job, w_mach, b_mach, w_fc, b_fc = params
    features = jnp.stack([proc_times, assigned], axis=1).astype(jnp.float32)
    job_feat = (features @ w_job + b_job).mean(axis=0)                    # [d_model]
    mach_feat = (machine_times[None, :].astype(jnp.float32) @ w_mach + b_mach)[0]
    x = jnp.concatenate([job_feat, mach_feat], axis=-1)
    return (x @ w_fc[:, 0]) + b_fc[0, 0]


# ----------------------------------------------------------------------------
if __name__ == "__main__":
    n_jobs, n_machines, d_model = 8, 4, D_MODEL
    B = 5

    key = jax.random.PRNGKey(0)
    k_p, k_a, k_m, k_w, k_pb, k_ab, k_mb = jax.random.split(key, 7)

    proc_times = jax.random.uniform(k_p, (n_jobs,), jnp.float32, 0.0, 10.0)
    assigned = jax.random.bernoulli(k_a, 0.5, (n_jobs,)).astype(jnp.float32)
    machine_times = jax.random.uniform(k_m, (n_machines,), jnp.float32, 0.0, 20.0)

    params = init_params(k_w, n_machines, d_model)
    param_slab = pack_params(params, n_machines, d_model)   # pack once, reuse

    # Single call (matches the PyTorch forward signature / semantics).
    forward = jax.jit(critic_forward)
    value = forward(proc_times, assigned, machine_times, param_slab)
    jax.block_until_ready(value)
    ref = critic_reference(proc_times, assigned, machine_times, params)
    assert jnp.allclose(value, ref, atol=1e-4, rtol=1e-4), (value, ref)

    # Batched path (RL inner-loop throughput): one launch, slab DMA'd once.
    proc_b = jax.random.uniform(k_pb, (B, n_jobs), jnp.float32, 0.0, 10.0)
    asgn_b = jax.random.bernoulli(k_ab, 0.5, (B, n_jobs)).astype(jnp.float32)
    mach_b = jax.random.uniform(k_mb, (B, n_machines), jnp.float32, 0.0, 20.0)

    forward_b = jax.jit(critic_forward_batched)
    values_b = forward_b(proc_b, asgn_b, mach_b, param_slab)
    jax.block_until_ready(values_b)
    refs_b = jax.vmap(critic_reference, in_axes=(0, 0, 0, None))(
        proc_b, asgn_b, mach_b, params)
    assert jnp.allclose(values_b, refs_b, atol=1e-4, rtol=1e-4), (values_b, refs_b)

    print("KERNEL_OK")
</pallas_src>

<mosaic_0001>
module attributes {stable_mosaic.version = 11 : i64} {
  func.func @kernel(%arg0: memref<1x8xf32, #tpu.memory_space<vmem>>, %arg1: memref<1x8xf32, #tpu.memory_space<vmem>>, %arg2: memref<4x1xf32, #tpu.memory_space<vmem>>, %arg3: memref<16x128xf32, #tpu.memory_space<vmem>>, %arg4: memref<1xf32, #tpu.memory_space<smem>>) attributes {dimension_semantics = [], scalar_prefetch = 0 : i64, scratch_operands = 0 : i64, tpu.core_type = #tpu.core_type<tc>} {
    %c0 = arith.constant 0 : index
    %c0_0 = arith.constant 0 : index
    %0 = vector.load %arg0[%c0, %c0_0] : memref<1x8xf32, #tpu.memory_space<vmem>>, vector<1x8xf32>
    %1 = vector.shape_cast %0 : vector<1x8xf32> to vector<1x1x8xf32>
    %cst = arith.constant dense<0.000000e+00> : vector<1xf32>
    %2 = vector.multi_reduction <add>, %1, %cst [1, 2] : vector<1x1x8xf32> to vector<1xf32>
    %3 = vector.shape_cast %2 : vector<1xf32> to vector<1x1x1xf32>
    %4 = vector.extract %3[0, 0, 0] : f32 from vector<1x1x1xf32>
    %cst_1 = arith.constant 1.250000e-01 : f32
    %5 = arith.mulf %4, %cst_1 : f32
    %c0_2 = arith.constant 0 : index
    %c0_3 = arith.constant 0 : index
    %6 = vector.load %arg1[%c0_2, %c0_3] : memref<1x8xf32, #tpu.memory_space<vmem>>, vector<1x8xf32>
    %7 = vector.shape_cast %6 : vector<1x8xf32> to vector<1x1x8xf32>
    %cst_4 = arith.constant dense<0.000000e+00> : vector<1xf32>
    %8 = vector.multi_reduction <add>, %7, %cst_4 [1, 2] : vector<1x1x8xf32> to vector<1xf32>
    %9 = vector.shape_cast %8 : vector<1xf32> to vector<1x1x1xf32>
    %10 = vector.extract %9[0, 0, 0] : f32 from vector<1x1x1xf32>
    %cst_5 = arith.constant 1.250000e-01 : f32
    %11 = arith.mulf %10, %cst_5 : f32
    %c0_6 = arith.constant 0 : index
    %c0_7 = arith.constant 0 : index
    %12 = vector.load %arg2[%c0_6, %c0_7] : memref<4x1xf32, #tpu.memory_space<vmem>>, vector<4x1xf32>
    %c0_8 = arith.constant 0 : index
    %c0_9 = arith.constant 0 : index
    %13 = vector.load %arg3[%c0_8, %c0_9] : memref<16x128xf32, #tpu.memory_space<vmem>>, vector<1x128xf32>
    %14 = vector.broadcast %5 : f32 to vector<1x128xf32>
    %15 = arith.mulf %14, %13 : vector<1x128xf32>
    %c1 = arith.constant 1 : index
    %c0_10 = arith.constant 0 : index
    %16 = vector.load %arg3[%c1, %c0_10] : memref<16x128xf32, #tpu.memory_space<vmem>>, vector<1x128xf32>
    %17 = vector.broadcast %11 : f32 to vector<1x128xf32>
    %18 = arith.mulf %17, %16 : vector<1x128xf32>
    %19 = arith.addf %15, %18 : vector<1x128xf32>
    %c2 = arith.constant 2 : index
    %c0_11 = arith.constant 0 : index
    %20 = vector.load %arg3[%c2, %c0_11] : memref<16x128xf32, #tpu.memory_space<vmem>>, vector<1x128xf32>
    %21 = arith.addf %19, %20 : vector<1x128xf32>
    %c8 = arith.constant 8 : index
    %c0_12 = arith.constant 0 : index
    %22 = vector.load %arg3[%c8, %c0_12] : memref<16x128xf32, #tpu.memory_space<vmem>>, vector<4x128xf32>
    %23 = vector.broadcast %12 : vector<4x1xf32> to vector<4x128xf32>
    %24 = arith.mulf %23, %22 : vector<4x128xf32>
    %cst_13 = arith.constant dense<0.000000e+00> : vector<128xf32>
    %25 = vector.multi_reduction <add>, %24, %cst_13 [0] : vector<4x128xf32> to vector<128xf32>
    %26 = vector.shape_cast %25 : vector<128xf32> to vector<1x128xf32>
    %c3 = arith.constant 3 : index
    %c0_14 = arith.constant 0 : index
    %27 = vector.load %arg3[%c3, %c0_14] : memref<16x128xf32, #tpu.memory_space<vmem>>, vector<1x128xf32>
    %28 = arith.addf %26, %27 : vector<1x128xf32>
    %c4 = arith.constant 4 : index
    %c0_15 = arith.constant 0 : index
    %29 = vector.load %arg3[%c4, %c0_15] : memref<16x128xf32, #tpu.memory_space<vmem>>, vector<1x128xf32>
    %30 = arith.mulf %21, %29 : vector<1x128xf32>
    %c5 = arith.constant 5 : index
    %c0_16 = arith.constant 0 : index
    %31 = vector.load %arg3[%c5, %c0_16] : memref<16x128xf32, #tpu.memory_space<vmem>>, vector<1x128xf32>
    %32 = arith.mulf %28, %31 : vector<1x128xf32>
    %33 = arith.addf %30, %32 : vector<1x128xf32>
    %c6 = arith.constant 6 : index
    %c0_17 = arith.constant 0 : index
    %34 = vector.load %arg3[%c6, %c0_17] : memref<16x128xf32, #tpu.memory_space<vmem>>, vector<1x128xf32>
    %35 = arith.addf %33, %34 : vector<1x128xf32>
    %36 = vector.shape_cast %35 : vector<1x128xf32> to vector<1x1x128xf32>
    %cst_18 = arith.constant dense<0.000000e+00> : vector<1xf32>
    %37 = vector.multi_reduction <add>, %36, %cst_18 [1, 2] : vector<1x1x128xf32> to vector<1xf32>
    %38 = vector.shape_cast %37 : vector<1xf32> to vector<1x1x1xf32>
    %39 = vector.extract %38[0, 0, 0] : f32 from vector<1x1x1xf32>
    %c0_19 = arith.constant 0 : index
    %40 = memref.load %arg4[%c0_19] : memref<1xf32, #tpu.memory_space<smem>>
    memref.store %39, %arg4[%c0_19] : memref<1xf32, #tpu.memory_space<smem>>
    return
  }
}

</mosaic_0001>

<llo_original>
// kernel: critic_forward.1
$region0: #{critic_forward.1}
  #allocation0 [shape = 'u32[]', space=smem, size = 0x4, offset = 0x4, fixed_abs, tag = 'smem constant byte address 0x4 - core index']
  #allocation1 [shape = 'u32[72,128]{1,0:T(1,128)}', space=vmem, size = 0x9000, scoped, tag = 'internal scratch']
  %s0 = inlined_call_operand.vmem [shape: f32[1,8], index: 0, kind: input, shape index: {}]
  %s1 = inlined_call_operand.vmem [shape: f32[1,8], index: 1, kind: input, shape index: {}]
  %s2 = inlined_call_operand.vmem [shape: f32[4,1], index: 2, kind: input, shape index: {}]
  %s3 = inlined_call_operand.hbm [shape: f32[16,128], index: 3, kind: input, shape index: {}]
  %s4 = inlined_call_operand.hbm [shape: f32[1], index: 4, kind: output, shape index: {}]
  %s5 = sld [smem:[#allocation0]]
  $region30: #{critic_forward.1} parent=0
    _
  %s7 = ssub.s32 1, %s5
  %s8 = scalar_select 0, %s7, %s5
  $region1: #{critic_forward.1} parent=0
    #allocation2 [shape = 'u8[8192]{0}', space=vmem, size = 0x2000, scoped, tag = 'input window, operand 3, single buffered']
    #allocation3 [shape = 's32[1]{0}', space=sflag, size = 0x4, scoped, tag = 'scoped memory for critic_forward.1']
    #allocation4 [shape = 's32[1]{0}', space=sflag, size = 0x4, scoped, tag = 'scoped memory for critic_forward.1']
    #allocation5 [shape = 'u8[512]{0}', space=smem, size = 0x200, scoped, tag = 'output window, operand 0, single buffered']
    %9 = vsyncpa [#allocation3], 0
    %10 = vsyncpa [#allocation4], 0
    // Predicated region
    $region2: #{critic_forward.1} parent=1 // pred_check
      _
    $region3: #{critic_forward.1} parent=1 // pred_check_branch
      %12 = sbr.rel (0) target = $region5
    $region4: #{critic_forward.1} parent=1 // pred_region
      _
    $region5: #{critic_forward.1} parent=1 // pred_fallthru
      _
    // Predicated region
    $region6: #{critic_forward.1} parent=1 // pred_check
      _
    $region7: #{critic_forward.1} parent=1 // pred_check_branch
      %14 = sbr.rel (0) target = $region9
    $region8: #{critic_forward.1} parent=1 // pred_region
      _
    $region9: #{critic_forward.1} parent=1 // pred_fallthru
      _
    // Predicated region
    $region10: #{critic_forward.1} parent=1 // pred_check
      _
    $region11: #{critic_forward.1} parent=1 // pred_check_branch
      %16 = sbr.rel (0) target = $region13
    $region12: #{critic_forward.1} parent=1 // pred_region
      _
    $region13: #{critic_forward.1} parent=1 // pred_fallthru
      _
    // Predicated region
    $region14: #{critic_forward.1} parent=1 // pred_check
      _
    $region15: #{critic_forward.1} parent=1 // pred_check_branch
      %18 = sbr.rel (0) target = $region17
    $region16: #{critic_forward.1} parent=1 // pred_region
      %20 = vsyncadd [#allocation3], 0
      %s21 = sshll.u32 %s3, 4
      %s22 = int_to_ptr.hbm [resolvable:$true] %s21
      %s23 = sshll.u32 [#allocation2], 4
      %s24 = int_to_ptr.vmem [resolvable:$true] %s23
      %29 = dma.hbm_to_vmem [thread:$0]  %s22, 256, %s24, [#allocation3], 128, 128, 8
    $region17: #{critic_forward.1} parent=1 // pred_fallthru
      _
    // Predicated region
    $region18: #{critic_forward.1} parent=1 // pred_check
      _
    $region19: #{critic_forward.1} parent=1 // pred_check_branch
      %31 = sbr.rel (0) target = $region21
    $region20: #{critic_forward.1} parent=1 // pred_region
      %33 = dma.done [#allocation3], 256
    $region21: #{critic_forward.1} parent=1 // pred_fallthru
      _
    %v34 = vld [vmem:[%s0] sm:$0x1]
    %vm35 = vcmask 57344
    %v36 = vsel %vm35, %v34, 0.0
    %37 = vadd.xlane.f32.xlu0 %v36
    %v38 = vpop.xlane.xlu0 %37
    %v39 = vrot.slane %v38, 4
    %v40 = vadd.f32 %v38, %v39
    %v41 = vrot.slane %v40, 2
    %v42 = vadd.f32 %v40, %v41
    %v43 = vrot.slane %v42, 1
    %v44 = vadd.f32 %v42, %v43
    %s45 = vtos %v44
    %s46 = smul.f32 %s45, 0.125
    %v47 = vld [vmem:[%s1] sm:$0x1]
    %v48 = vsel %vm35, %v47, 0.0
    %49 = vadd.xlane.f32.xlu0 %v48
    %v50 = vpop.xlane.xlu0 %49
    %v51 = vrot.slane %v50, 4
    %v52 = vadd.f32 %v50, %v51
    %v53 = vrot.slane %v52, 2
    %v54 = vadd.f32 %v52, %v53
    %v55 = vrot.slane %v54, 1
    %v56 = vadd.f32 %v54, %v55
    %s57 = vtos %v56
    %s58 = smul.f32 %s57, 0.125
    %v59 = vld [vmem:[%s2] sm:$0xf]
    %v60 = vld [vmem:[#allocation2] sm:$0x1]
    %v61 = vstv %s46
    %v62 = vmul.f32 %v61, %v60
    %v63 = vld [vmem:[#allocation2 + $0x1] sm:$0x1]
    %v64 = vstv %s58
    %v65 = vmul.f32 %v64, %v63
    %v66 = vadd.f32 %v62, %v65
    %v67 = vld [vmem:[#allocation2 + $0x2] sm:$0x1]
    %v68 = vadd.f32 %v66, %v67
    %v69 = vld [vmem:[#allocation2 + $0x8] sm:$0xf]
    %71 = vset.pattern.permute.xlu0 0
    %72 = vperm.xlu0 %71, %v59
    %v73 = vpop.permute.xlu0 %72
    %v75 = vmul.f32 %v73, %v69
    %vm76 = vcmask 1043456
    %v77 = vsel %vm76, %v75, 0.0
    %v78 = vrot.slane %v77, 4
    %v79 = vadd.f32 %v77, %v78
    %v80 = vrot.slane %v79, 2
    %v81 = vadd.f32 %v79, %v80
    %v82 = vrot.slane %v81, 1
    %v83 = vadd.f32 %v81, %v82
    %v84 = vld [vmem:[#allocation2 + $0x3] sm:$0x1]
    %v85 = vadd.f32 %v83, %v84
    %v86 = vld [vmem:[#allocation2 + $0x4] sm:$0x1]
    %v87 = vmul.f32 %v68, %v86
    %v88 = vld [vmem:[#allocation2 + $0x5] sm:$0x1]
    %v89 = vmul.f32 %v85, %v88
    %v90 = vadd.f32 %v87, %v89
    %v91 = vld [vmem:[#allocation2 + $0x6] sm:$0x1]
    %v92 = vadd.f32 %v90, %v91
    %vm93 = vcmask 1040384
    %v94 = vsel %vm93, %v92, 0.0
    %95 = vadd.xlane.f32.xlu0 %v94
    %v96 = vpop.xlane.xlu0 %95
    %v97 = vrot.slane %v96, 4
    %v98 = vadd.f32 %v96, %v97
    %v99 = vrot.slane %v98, 2
    %v100 = vadd.f32 %v98, %v99
    %v101 = vrot.slane %v100, 1
    %v102 = vadd.f32 %v100, %v101
    %s103 = vtos %v102
    %s104 = scalar_lea.smem [#allocation5], 0
    %105 = sst [smem:[%s104]] %s103
    // Predicated region
    $region22: #{critic_forward.1} parent=1 // pred_check
      _
    $region23: #{critic_forward.1} parent=1 // pred_check_branch
      %107 = sbr.rel (0) target = $region25
    $region24: #{critic_forward.1} parent=1 // pred_region
      %109 = vsyncadd [#allocation4], 0
      %s111 = sshll.u32 %s4, 4
      %s112 = int_to_ptr.hbm [resolvable:$true] %s111
      %114 = dma.smem_to_hbm [#allocation5], 16, %s112, [#allocation4]
    $region25: #{critic_forward.1} parent=1 // pred_fallthru
      _
    // Predicated region
    $region26: #{critic_forward.1} parent=1 // pred_check
      _
    $region27: #{critic_forward.1} parent=1 // pred_check_branch
      %116 = sbr.rel (0) target = $region29
    $region28: #{critic_forward.1} parent=1 // pred_region
      %118 = dma.done [#allocation4], 16
    $region29: #{critic_forward.1} parent=1 // pred_fallthru
      _
    %119 = sfence
    %120 = vsyncpa [#allocation3], 1
    %121 = vsyncpa [#allocation4], 1

</llo_original>
